<compile_context>
chip_gen: v7x
topology: tpu7x:2x2x1
jax: 0.10.0
libtpu: 0.0.40
codegen_flags: <defaults>
</compile_context>

<pallas_src>
import functools
import random

import jax
import jax.numpy as jnp
import numpy as np
from jax.experimental import pallas as pl
from jax.experimental.pallas import tpu as pltpu


def _round_up(x, m):
    return (x + m - 1) // m * m


# ------------------------- fused 3x3 conv (MXU) ---------------------------- #

def _conv3x3_kernel(x_ref, w_ref, b_ref, m_ref, o_ref, *, img_w):
    # x_ref: (1, C, H*W)  one image, channels on sublanes, pixels on lanes
    # w_ref: (9, O, C)    tap-major weights
    # b_ref: (O, 1)       bias
    # m_ref: (9, H*W)     per-tap border-validity masks (1.0 inside, 0.0 out)
    # o_ref: (1, O, H*W)
    x = x_ref[0]                                  # (C, HW)
    hw = x.shape[-1]
    acc = None
    tap = 0
    for dy in (-1, 0, 1):
        for dx in (-1, 0, 1):
            s = dy * img_w + dx                   # flat-pixel shift of this tap
            # xs[:, p] = x[:, p + s]   (roll follows jnp.roll convention)
            xs = x if s == 0 else pltpu.roll(x, (-s) % hw, axis=1)
            xs = xs * m_ref[tap:tap + 1, :]       # zero taps that fall outside
            t = jnp.dot(w_ref[tap], xs, preferred_element_type=jnp.float32)
            acc = t if acc is None else acc + t
            tap += 1
    o_ref[0] = (acc + b_ref[...]).astype(o_ref.dtype)


def pallas_conv3x3(image, weight, bias):
    """3x3 'SAME' conv, NCHW, as one fused Pallas kernel (grid over images).

    No host-side im2col, no K/N padding to 128, no staging copies — the 9 taps
    are built in VMEM with lane rolls + masks and accumulated with 9 MXU dots.
    """
    n, c, h, w = image.shape
    o = weight.shape[0]
    hw = h * w

    x = image.reshape(n, c, hw)                                   # free reshape
    w_taps = jnp.transpose(weight.astype(jnp.float32).reshape(o, c, 9),
                           (2, 0, 1))                             # (9, O, C)
    b2 = bias.astype(jnp.float32).reshape(o, 1)

    yy, xx = np.meshgrid(np.arange(h), np.arange(w), indexing="ij")
    m = [((yy + dy >= 0) & (yy + dy < h) & (xx + dx >= 0) & (xx + dx < w))
         .reshape(-1).astype(np.float32)
         for dy in (-1, 0, 1) for dx in (-1, 0, 1)]
    masks = jnp.asarray(np.stack(m))                              # (9, HW)

    out = pl.pallas_call(
        functools.partial(_conv3x3_kernel, img_w=w),
        out_shape=jax.ShapeDtypeStruct((n, o, hw), jnp.float32),
        grid=(n,),
        in_specs=[pl.BlockSpec((1, c, hw), lambda i: (i, 0, 0)),
                  pl.BlockSpec((9, o, c), lambda i: (0, 0, 0)),
                  pl.BlockSpec((o, 1), lambda i: (0, 0)),
                  pl.BlockSpec((9, hw), lambda i: (0, 0))],
        out_specs=pl.BlockSpec((1, o, hw), lambda i: (i, 0, 0)),
        compiler_params=pltpu.CompilerParams(
            dimension_semantics=("parallel",),
            vmem_limit_bytes=32 * 1024 * 1024),
    )(x, w_taps, b2, masks)
    # TODO(synk): for very large H*W, additionally tile the pixel axis with a
    # +/-W halo so the per-image slab does not have to fit VMEM whole.
    return out.reshape(n, o, h, w)


# --------------------------- horizontal flip ------------------------------- #

def _hflip_kernel(x_ref, o_ref, *, width):
    # Reverse each aligned `width`-lane group of the tile with a log2(width)
    # shift+select butterfly (reverse == lane-index XOR (width-1)).  Rolls of
    # the whole slab are safe: when bit b of the lane index is 0, lane+b stays
    # inside the same group, and vice versa — so the wrap never matters.
    x = x_ref[...]
    lanes = x.shape[-1]
    lane = jax.lax.broadcasted_iota(jnp.int32, x.shape, dimension=1)
    b = 1
    while b < width:
        fwd = pltpu.roll(x, (lanes - b) % lanes, axis=1)   # fwd[i] = x[i + b]
        bwd = pltpu.roll(x, b, axis=1)                     # bwd[i] = x[i - b]
        x = jnp.where((lane & b) == 0, fwd, bwd)
        b *= 2
    o_ref[...] = x


def pallas_hflip(image, *, max_block_rows=512, max_lanes=512):
    n, c, h, w = image.shape
    wp = int(pl.next_power_of_2(w))
    rows = n * c * h

    flat2 = image.reshape(rows, w)                 # free reshape
    if wp != w:
        # TODO(synk): non-power-of-two W pays one pad staging copy; padded
        # zeros land at the front of each reversed group and are cropped below.
        flat2 = jnp.pad(flat2, ((0, 0), (0, wp - w)))
    total = rows * wp

    # Pack several W-rows into one lane slab so stores are full-width vst:
    # lanes is a multiple of wp and (for wp < 128) a multiple of 128.
    if wp >= 128:
        g = 1
    else:
        g = 128 // wp
        while (g * 2 * wp <= max_lanes and rows % (g * 2) == 0
               and rows // (g * 2) >= 8):
            g *= 2
    lanes = g * wp

    rows_p = _round_up(max(pl.cdiv(total, lanes), 1), 8)
    bm = min(max_block_rows, rows_p)
    if bm == rows_p and rows_p >= 16 and rows_p % 16 == 0:
        bm = rows_p // 2            # >=2 blocks so v7x's 2nd TensorCore has work
    while rows_p % bm != 0:
        bm -= 8

    flat = flat2.reshape(-1)
    pad = rows_p * lanes - total
    if pad:
        flat = jnp.pad(flat, (0, pad))
    flat = flat.reshape(rows_p, lanes)

    out = pl.pallas_call(
        functools.partial(_hflip_kernel, width=wp),
        out_shape=jax.ShapeDtypeStruct((rows_p, lanes), image.dtype),
        grid=(rows_p // bm,),
        in_specs=[pl.BlockSpec((bm, lanes), lambda i: (i, 0))],
        out_specs=pl.BlockSpec((bm, lanes), lambda i: (i, 0)),
        compiler_params=pltpu.CompilerParams(
            dimension_semantics=("parallel",),
            vmem_limit_bytes=32 * 1024 * 1024),
    )(flat)

    out = out.reshape(-1)[:total].reshape(rows, wp)
    if wp != w:
        out = out[:, wp - w:]       # padded zeros sit at the front after reverse
    return out.reshape(n, c, h, w)


# --------------------------- elementwise affine ---------------------------- #

def _affine_kernel(params_ref, x_ref, o_ref):
    # params_ref lives in SMEM: [gain, bias] — one compiled kernel serves any
    # parameter value.
    o_ref[...] = x_ref[...] * params_ref[0] + params_ref[1]


def pallas_affine(x, gain, bias, *, max_block_rows=1024,
                  max_tile_bytes=2 * 1024 * 1024):
    """x*gain + bias on a lane-dense, copy-free reshape of x."""
    shape = x.shape
    total = x.size
    xf = x.astype(jnp.float32)

    lanes = None
    for cand in (2048, 1024, 512, 256, 128):
        if total % cand == 0 and (total // cand) >= 8 and (total // cand) % 8 == 0:
            lanes = cand
            break
    if lanes is None:
        # TODO(synk): awkward sizes fall back to one padded staging copy.
        lanes = 256
        rows = _round_up(pl.cdiv(total, lanes), 8)
        flat = jnp.pad(xf.reshape(-1),
                       (0, rows * lanes - total)).reshape(rows, lanes)
        padded = True
    else:
        rows = total // lanes
        flat = xf.reshape(rows, lanes)             # free reshape, no staging copy
        padded = False

    bm = min(max_block_rows, rows, max(8, max_tile_bytes // (lanes * 4)))
    if bm == rows and rows >= 16 and rows % 16 == 0:
        bm = rows // 2              # >=2 blocks so v7x's 2nd TensorCore has work
    while rows % bm != 0:
        bm -= 8

    params = jnp.asarray([gain, bias], jnp.float32)
    out = pl.pallas_call(
        _affine_kernel,
        out_shape=jax.ShapeDtypeStruct((rows, lanes), jnp.float32),
        grid=(rows // bm,),
        in_specs=[pl.BlockSpec(memory_space=pltpu.MemorySpace.SMEM),
                  pl.BlockSpec((bm, lanes), lambda i: (i, 0))],
        out_specs=pl.BlockSpec((bm, lanes), lambda i: (i, 0)),
        compiler_params=pltpu.CompilerParams(
            dimension_semantics=("parallel",),
            vmem_limit_bytes=32 * 1024 * 1024),
    )(params, flat)

    if padded:
        out = out.reshape(-1)[:total]
    return out.reshape(shape)


# ----------------------------- transform family ---------------------------- #

class Conv3x3Transform:
    """nn.Conv2d(C, C, kernel_size=3, padding=1) — deterministic init."""

    def __init__(self, channels, key):
        kw, kb = jax.random.split(key)
        fan_in = channels * 9
        bound = 1.0 / np.sqrt(fan_in)
        self.weight = jax.random.uniform(
            kw, (channels, channels, 3, 3), jnp.float32, -bound, bound)
        self.bias = jax.random.uniform(
            kb, (channels,), jnp.float32, -bound, bound)

    def __call__(self, image):
        return pallas_conv3x3(image, self.weight, self.bias)


class HFlipTransform:
    def __call__(self, image):
        return pallas_hflip(image)


class BrightnessTransform:
    def __init__(self, gain=1.25, bias=0.1):
        self.gain = float(gain)
        self.bias = float(bias)

    def __call__(self, image):
        return pallas_affine(image, self.gain, self.bias)


class RandomTransformation:
    """Mirror of the PyTorch module: pick one transform at random, apply it."""

    def __init__(self, family):
        self.family = family

    def __call__(self, image):
        transform = random.choice(self.family)  # host-side choice, like PyTorch
        return transform(image)


# ----------------------------------- main ----------------------------------- #

if __name__ == "__main__":
    random.seed(0)  # deterministic `random.choice`
    key = jax.random.PRNGKey(0)
    k_img, k_conv = jax.random.split(key)

    image = jax.random.normal(k_img, (2, 4, 16, 16), jnp.float32)

    conv_t = Conv3x3Transform(4, k_conv)
    flip_t = HFlipTransform()
    bright_t = BrightnessTransform()

    # sanity-check every family member against a pure-JAX reference
    conv_ref = jax.lax.conv_general_dilated(
        image, conv_t.weight, (1, 1), "SAME",
        dimension_numbers=("NCHW", "OIHW", "NCHW"),
    ) + conv_t.bias[None, :, None, None]
    # f32 operands, f32 accumulate; tolerance covers the MXU f32 matmul path.
    np.testing.assert_allclose(np.asarray(conv_t(image)), np.asarray(conv_ref),
                               rtol=2e-2, atol=2e-2)
    np.testing.assert_allclose(np.asarray(flip_t(image)),
                               np.asarray(image[..., ::-1]), rtol=0, atol=0)
    np.testing.assert_allclose(np.asarray(bright_t(image)),
                               np.asarray(image * 1.25 + 0.1),
                               rtol=1e-6, atol=1e-6)

    module = RandomTransformation([conv_t, flip_t, bright_t])
    out = module(image)
    jax.block_until_ready(out)
    assert out.shape == image.shape and out.dtype == jnp.float32
    print("KERNEL_OK")
</pallas_src>

<mosaic_0001>
module attributes {stable_mosaic.version = 11 : i64} {
  func.func @_conv3x3_kernel(%arg0: i32, %arg1: memref<1x4x256xf32, #tpu.memory_space<vmem>>, %arg2: memref<9x4x4xf32, #tpu.memory_space<vmem>>, %arg3: memref<4x1xf32, #tpu.memory_space<vmem>>, %arg4: memref<9x256xf32, #tpu.memory_space<vmem>>, %arg5: memref<1x4x256xf32, #tpu.memory_space<vmem>>) attributes {dimension_semantics = [#tpu.dimension_semantics<parallel>], iteration_bounds = array<i64: 2>, scalar_prefetch = 0 : i64, scratch_operands = 0 : i64, tpu.core_type = #tpu.core_type<tc>, window_params = [{transform_indices = @transform_0, window_bounds = array<i64: 1, 4, 256>}, {pipeline_mode = #tpu.pipeline_mode<synchronous>, transform_indices = @transform_1, window_bounds = array<i64: 9, 4, 4>}, {pipeline_mode = #tpu.pipeline_mode<synchronous>, transform_indices = @transform_2, window_bounds = array<i64: 4, 1>}, {pipeline_mode = #tpu.pipeline_mode<synchronous>, transform_indices = @transform_3, window_bounds = array<i64: 9, 256>}, {transform_indices = @transform_4, window_bounds = array<i64: 1, 4, 256>}]} {
    %c0 = arith.constant 0 : index
    %c0_0 = arith.constant 0 : index
    %c0_1 = arith.constant 0 : index
    %0 = vector.load %arg1[%c0, %c0_0, %c0_1] : memref<1x4x256xf32, #tpu.memory_space<vmem>>, vector<1x4x256xf32>
    %1 = vector.shape_cast %0 : vector<1x4x256xf32> to vector<4x256xf32>
    %c17_i32 = arith.constant 17 : i32
    %2 = tpu.dynamic_rotate %1 by %c17_i32 dim 1 : vector<4x256xf32>, i32 -> vector<4x256xf32>
    %c0_2 = arith.constant 0 : index
    %c0_3 = arith.constant 0 : index
    %3 = vector.load %arg4[%c0_2, %c0_3] : memref<9x256xf32, #tpu.memory_space<vmem>>, vector<1x256xf32>
    %4 = vector.broadcast %3 : vector<1x256xf32> to vector<4x256xf32>
    %5 = arith.mulf %2, %4 : vector<4x256xf32>
    %c0_4 = arith.constant 0 : index
    %c0_5 = arith.constant 0 : index
    %c0_6 = arith.constant 0 : index
    %6 = vector.load %arg2[%c0_4, %c0_5, %c0_6] : memref<9x4x4xf32, #tpu.memory_space<vmem>>, vector<1x4x4xf32>
    %7 = vector.shape_cast %6 : vector<1x4x4xf32> to vector<4x4xf32>
    %cst = arith.constant dense<0.000000e+00> : vector<4x256xf32>
    %8 = tpu.matmul %7, %5, %cst {dimension_numbers = #tpu.dot_dimension_numbers<[1], [0], [0], [1], [0, 0, 1, 1], [], []>} : vector<4x4xf32>, vector<4x256xf32>, vector<4x256xf32> -> vector<4x256xf32>
    %c16_i32 = arith.constant 16 : i32
    %9 = tpu.dynamic_rotate %1 by %c16_i32 dim 1 : vector<4x256xf32>, i32 -> vector<4x256xf32>
    %c1 = arith.constant 1 : index
    %c0_7 = arith.constant 0 : index
    %10 = vector.load %arg4[%c1, %c0_7] : memref<9x256xf32, #tpu.memory_space<vmem>>, vector<1x256xf32>
    %11 = vector.broadcast %10 : vector<1x256xf32> to vector<4x256xf32>
    %12 = arith.mulf %9, %11 : vector<4x256xf32>
    %c1_8 = arith.constant 1 : index
    %c0_9 = arith.constant 0 : index
    %c0_10 = arith.constant 0 : index
    %13 = vector.load %arg2[%c1_8, %c0_9, %c0_10] : memref<9x4x4xf32, #tpu.memory_space<vmem>>, vector<1x4x4xf32>
    %14 = vector.shape_cast %13 : vector<1x4x4xf32> to vector<4x4xf32>
    %cst_11 = arith.constant dense<0.000000e+00> : vector<4x256xf32>
    %15 = tpu.matmul %14, %12, %cst_11 {dimension_numbers = #tpu.dot_dimension_numbers<[1], [0], [0], [1], [0, 0, 1, 1], [], []>} : vector<4x4xf32>, vector<4x256xf32>, vector<4x256xf32> -> vector<4x256xf32>
    %16 = arith.addf %8, %15 : vector<4x256xf32>
    %c15_i32 = arith.constant 15 : i32
    %17 = tpu.dynamic_rotate %1 by %c15_i32 dim 1 : vector<4x256xf32>, i32 -> vector<4x256xf32>
    %c2 = arith.constant 2 : index
    %c0_12 = arith.constant 0 : index
    %18 = vector.load %arg4[%c2, %c0_12] : memref<9x256xf32, #tpu.memory_space<vmem>>, vector<1x256xf32>
    %19 = vector.broadcast %18 : vector<1x256xf32> to vector<4x256xf32>
    %20 = arith.mulf %17, %19 : vector<4x256xf32>
    %c2_13 = arith.constant 2 : index
    %c0_14 = arith.constant 0 : index
    %c0_15 = arith.constant 0 : index
    %21 = vector.load %arg2[%c2_13, %c0_14, %c0_15] : memref<9x4x4xf32, #tpu.memory_space<vmem>>, vector<1x4x4xf32>
    %22 = vector.shape_cast %21 : vector<1x4x4xf32> to vector<4x4xf32>
    %cst_16 = arith.constant dense<0.000000e+00> : vector<4x256xf32>
    %23 = tpu.matmul %22, %20, %cst_16 {dimension_numbers = #tpu.dot_dimension_numbers<[1], [0], [0], [1], [0, 0, 1, 1], [], []>} : vector<4x4xf32>, vector<4x256xf32>, vector<4x256xf32> -> vector<4x256xf32>
    %24 = arith.addf %16, %23 : vector<4x256xf32>
    %c1_i32 = arith.constant 1 : i32
    %25 = tpu.dynamic_rotate %1 by %c1_i32 dim 1 : vector<4x256xf32>, i32 -> vector<4x256xf32>
    %c3 = arith.constant 3 : index
    %c0_17 = arith.constant 0 : index
    %26 = vector.load %arg4[%c3, %c0_17] : memref<9x256xf32, #tpu.memory_space<vmem>>, vector<1x256xf32>
    %27 = vector.broadcast %26 : vector<1x256xf32> to vector<4x256xf32>
    %28 = arith.mulf %25, %27 : vector<4x256xf32>
    %c3_18 = arith.constant 3 : index
    %c0_19 = arith.constant 0 : index
    %c0_20 = arith.constant 0 : index
    %29 = vector.load %arg2[%c3_18, %c0_19, %c0_20] : memref<9x4x4xf32, #tpu.memory_space<vmem>>, vector<1x4x4xf32>
    %30 = vector.shape_cast %29 : vector<1x4x4xf32> to vector<4x4xf32>
    %cst_21 = arith.constant dense<0.000000e+00> : vector<4x256xf32>
    %31 = tpu.matmul %30, %28, %cst_21 {dimension_numbers = #tpu.dot_dimension_numbers<[1], [0], [0], [1], [0, 0, 1, 1], [], []>} : vector<4x4xf32>, vector<4x256xf32>, vector<4x256xf32> -> vector<4x256xf32>
    %32 = arith.addf %24, %31 : vector<4x256xf32>
    %c4 = arith.constant 4 : index
    %c0_22 = arith.constant 0 : index
    %33 = vector.load %arg4[%c4, %c0_22] : memref<9x256xf32, #tpu.memory_space<vmem>>, vector<1x256xf32>
    %34 = vector.broadcast %33 : vector<1x256xf32> to vector<4x256xf32>
    %35 = arith.mulf %1, %34 : vector<4x256xf32>
    %c4_23 = arith.constant 4 : index
    %c0_24 = arith.constant 0 : index
    %c0_25 = arith.constant 0 : index
    %36 = vector.load %arg2[%c4_23, %c0_24, %c0_25] : memref<9x4x4xf32, #tpu.memory_space<vmem>>, vector<1x4x4xf32>
    %37 = vector.shape_cast %36 : vector<1x4x4xf32> to vector<4x4xf32>
    %cst_26 = arith.constant dense<0.000000e+00> : vector<4x256xf32>
    %38 = tpu.matmul %37, %35, %cst_26 {dimension_numbers = #tpu.dot_dimension_numbers<[1], [0], [0], [1], [0, 0, 1, 1], [], []>} : vector<4x4xf32>, vector<4x256xf32>, vector<4x256xf32> -> vector<4x256xf32>
    %39 = arith.addf %32, %38 : vector<4x256xf32>
    %c255_i32 = arith.constant 255 : i32
    %40 = tpu.dynamic_rotate %1 by %c255_i32 dim 1 : vector<4x256xf32>, i32 -> vector<4x256xf32>
    %c5 = arith.constant 5 : index
    %c0_27 = arith.constant 0 : index
    %41 = vector.load %arg4[%c5, %c0_27] : memref<9x256xf32, #tpu.memory_space<vmem>>, vector<1x256xf32>
    %42 = vector.broadcast %41 : vector<1x256xf32> to vector<4x256xf32>
    %43 = arith.mulf %40, %42 : vector<4x256xf32>
    %c5_28 = arith.constant 5 : index
    %c0_29 = arith.constant 0 : index
    %c0_30 = arith.constant 0 : index
    %44 = vector.load %arg2[%c5_28, %c0_29, %c0_30] : memref<9x4x4xf32, #tpu.memory_space<vmem>>, vector<1x4x4xf32>
    %45 = vector.shape_cast %44 : vector<1x4x4xf32> to vector<4x4xf32>
    %cst_31 = arith.constant dense<0.000000e+00> : vector<4x256xf32>
    %46 = tpu.matmul %45, %43, %cst_31 {dimension_numbers = #tpu.dot_dimension_numbers<[1], [0], [0], [1], [0, 0, 1, 1], [], []>} : vector<4x4xf32>, vector<4x256xf32>, vector<4x256xf32> -> vector<4x256xf32>
    %47 = arith.addf %39, %46 : vector<4x256xf32>
    %c241_i32 = arith.constant 241 : i32
    %48 = tpu.dynamic_rotate %1 by %c241_i32 dim 1 : vector<4x256xf32>, i32 -> vector<4x256xf32>
    %c6 = arith.constant 6 : index
    %c0_32 = arith.constant 0 : index
    %49 = vector.load %arg4[%c6, %c0_32] : memref<9x256xf32, #tpu.memory_space<vmem>>, vector<1x256xf32>
    %50 = vector.broadcast %49 : vector<1x256xf32> to vector<4x256xf32>
    %51 = arith.mulf %48, %50 : vector<4x256xf32>
    %c6_33 = arith.constant 6 : index
    %c0_34 = arith.constant 0 : index
    %c0_35 = arith.constant 0 : index
    %52 = vector.load %arg2[%c6_33, %c0_34, %c0_35] : memref<9x4x4xf32, #tpu.memory_space<vmem>>, vector<1x4x4xf32>
    %53 = vector.shape_cast %52 : vector<1x4x4xf32> to vector<4x4xf32>
    %cst_36 = arith.constant dense<0.000000e+00> : vector<4x256xf32>
    %54 = tpu.matmul %53, %51, %cst_36 {dimension_numbers = #tpu.dot_dimension_numbers<[1], [0], [0], [1], [0, 0, 1, 1], [], []>} : vector<4x4xf32>, vector<4x256xf32>, vector<4x256xf32> -> vector<4x256xf32>
    %55 = arith.addf %47, %54 : vector<4x256xf32>
    %c240_i32 = arith.constant 240 : i32
    %56 = tpu.dynamic_rotate %1 by %c240_i32 dim 1 : vector<4x256xf32>, i32 -> vector<4x256xf32>
    %c7 = arith.constant 7 : index
    %c0_37 = arith.constant 0 : index
    %57 = vector.load %arg4[%c7, %c0_37] : memref<9x256xf32, #tpu.memory_space<vmem>>, vector<1x256xf32>
    %58 = vector.broadcast %57 : vector<1x256xf32> to vector<4x256xf32>
    %59 = arith.mulf %56, %58 : vector<4x256xf32>
    %c7_38 = arith.constant 7 : index
    %c0_39 = arith.constant 0 : index
    %c0_40 = arith.constant 0 : index
    %60 = vector.load %arg2[%c7_38, %c0_39, %c0_40] : memref<9x4x4xf32, #tpu.memory_space<vmem>>, vector<1x4x4xf32>
    %61 = vector.shape_cast %60 : vector<1x4x4xf32> to vector<4x4xf32>
    %cst_41 = arith.constant dense<0.000000e+00> : vector<4x256xf32>
    %62 = tpu.matmul %61, %59, %cst_41 {dimension_numbers = #tpu.dot_dimension_numbers<[1], [0], [0], [1], [0, 0, 1, 1], [], []>} : vector<4x4xf32>, vector<4x256xf32>, vector<4x256xf32> -> vector<4x256xf32>
    %63 = arith.addf %55, %62 : vector<4x256xf32>
    %c239_i32 = arith.constant 239 : i32
    %64 = tpu.dynamic_rotate %1 by %c239_i32 dim 1 : vector<4x256xf32>, i32 -> vector<4x256xf32>
    %c8 = arith.constant 8 : index
    %c0_42 = arith.constant 0 : index
    %65 = vector.load %arg4[%c8, %c0_42] : memref<9x256xf32, #tpu.memory_space<vmem>>, vector<1x256xf32>
    %66 = vector.broadcast %65 : vector<1x256xf32> to vector<4x256xf32>
    %67 = arith.mulf %64, %66 : vector<4x256xf32>
    %c8_43 = arith.constant 8 : index
    %c0_44 = arith.constant 0 : index
    %c0_45 = arith.constant 0 : index
    %68 = vector.load %arg2[%c8_43, %c0_44, %c0_45] : memref<9x4x4xf32, #tpu.memory_space<vmem>>, vector<1x4x4xf32>
    %69 = vector.shape_cast %68 : vector<1x4x4xf32> to vector<4x4xf32>
    %cst_46 = arith.constant dense<0.000000e+00> : vector<4x256xf32>
    %70 = tpu.matmul %69, %67, %cst_46 {dimension_numbers = #tpu.dot_dimension_numbers<[1], [0], [0], [1], [0, 0, 1, 1], [], []>} : vector<4x4xf32>, vector<4x256xf32>, vector<4x256xf32> -> vector<4x256xf32>
    %71 = arith.addf %63, %70 : vector<4x256xf32>
    %c0_47 = arith.constant 0 : index
    %c0_48 = arith.constant 0 : index
    %72 = vector.load %arg3[%c0_47, %c0_48] : memref<4x1xf32, #tpu.memory_space<vmem>>, vector<4x1xf32>
    %73 = vector.broadcast %72 : vector<4x1xf32> to vector<4x256xf32>
    %74 = arith.addf %71, %73 : vector<4x256xf32>
    %c0_49 = arith.constant 0 : index
    %c0_50 = arith.constant 0 : index
    %c0_51 = arith.constant 0 : index
    %75 = vector.load %arg5[%c0_49, %c0_50, %c0_51] : memref<1x4x256xf32, #tpu.memory_space<vmem>>, vector<1x4x256xf32>
    %76 = vector.shape_cast %75 : vector<1x4x256xf32> to vector<4x256xf32>
    %77 = vector.shape_cast %74 : vector<4x256xf32> to vector<1x4x256xf32>
    tpu.vector_store %arg5[%c0_49, %c0_50, %c0_51], %77 {strides = array<i32>} : memref<1x4x256xf32, #tpu.memory_space<vmem>>, vector<1x4x256xf32>,
    return
  }
  func.func @transform_0(%arg0: i32) -> (i32, i32, i32) {
    %c0_i32 = arith.constant 0 : i32
    %c0_i32_0 = arith.constant 0 : i32
    %c0_i32_1 = arith.constant 0 : i32
    return %arg0, %c0_i32, %c0_i32_0 : i32, i32, i32
  }
  func.func @transform_1(%arg0: i32) -> (i32, i32, i32) {
    %c0_i32 = arith.constant 0 : i32
    %c0_i32_0 = arith.constant 0 : i32
    %c0_i32_1 = arith.constant 0 : i32
    %c0_i32_2 = arith.constant 0 : i32
    return %c0_i32, %c0_i32_0, %c0_i32_1 : i32, i32, i32
  }
  func.func @transform_2(%arg0: i32) -> (i32, i32) {
    %c0_i32 = arith.constant 0 : i32
    %c0_i32_0 = arith.constant 0 : i32
    %c0_i32_1 = arith.constant 0 : i32
    return %c0_i32, %c0_i32_0 : i32, i32
  }
  func.func @transform_3(%arg0: i32) -> (i32, i32) {
    %c0_i32 = arith.constant 0 : i32
    %c0_i32_0 = arith.constant 0 : i32
    %c0_i32_1 = arith.constant 0 : i32
    return %c0_i32, %c0_i32_0 : i32, i32
  }
  func.func @transform_4(%arg0: i32) -> (i32, i32, i32) {
    %c0_i32 = arith.constant 0 : i32
    %c0_i32_0 = arith.constant 0 : i32
    %c0_i32_1 = arith.constant 0 : i32
    return %arg0, %c0_i32, %c0_i32_0 : i32, i32, i32
  }
}

</mosaic_0001>

<llo_original>
// kernel: tpu_custom_call.1
$region0: #{tpu_custom_call.1}
  #allocation0 [shape = 'u32[]', space=smem, size = 0x4, offset = 0x4, fixed_abs, tag = 'smem constant byte address 0x4 - core index']
  #allocation1 [shape = 'u32[144,128]{1,0:T(1,128)}', space=vmem, size = 0x12000, scoped, tag = 'internal scratch']
  %s0 = inlined_call_operand.vmem [shape: f32[2,4,256], index: 0, kind: input, shape index: {}]
  %s1 = inlined_call_operand.vmem [shape: f32[9,4,4], index: 1, kind: input, shape index: {}]
  %s2 = inlined_call_operand.vmem [shape: f32[4,1], index: 2, kind: input, shape index: {}]
  %s3 = inlined_call_operand.vmem [shape: f32[9,256], index: 3, kind: input, shape index: {}]
  %s4 = inlined_call_operand.hbm [shape: f32[2,4,256], index: 4, kind: output, shape index: {}]
  %s5 = sld [smem:[#allocation0]]
  $region49: #{tpu_custom_call.1} parent=0
    _
  %s7 = ssub.s32 1, %s5
  %s8 = scalar_select 0, %s7, %s5
  $region1: #{tpu_custom_call.1} parent=0
    #allocation2 [shape = 'u8[8192]{0}', space=vmem, size = 0x2000, scoped, tag = 'output window, operand 0']
    #allocation3 [shape = 's32[2]{0}', space=sflag, size = 0x8, scoped, tag = 'scoped memory for tpu_custom_call.1']
    %9 = vsyncpa [#allocation3], 0
    %s10 = scalar_lea.sflag [#allocation3], 1
    %11 = vsyncpa %s10, 0
    loop: start=0, step=1, limit=4
    $region2: #{tpu_custom_call.1} parent=1 // loop_pre_header
      _
    $region3: #{tpu_custom_call.1} parent=1 // loop_header
      %s13 = sphi 0, %s17
      %p14 = scmp.ge.s32.totalorder %s13, 4
      %s23 = sphi 0, %s25
      %s26 = sphi 0, %s23
      %s27 = sphi 0, %s26
      %s43 = sphi 0, %s27
      %s47 = sphi 0, %s47
      %s49 = sphi 0, %s47
      %s50 = sphi 0, %s49
      %s64 = sphi 0, %s50
      %s68 = sphi 0, %s68
      %s70 = sphi 0, %s68
      %s71 = sphi 0, %s70
      %s85 = sphi 0, %s71
      %s89 = sphi 0, %s89
      %s91 = sphi 0, %s89
      %s92 = sphi 0, %s91
      %s106 = sphi 0, %s92
      %s112 = sphi 0, %s114
      %s115 = sphi 0, %s112
      %s116 = sphi 0, %s115
      %s132 = sphi 0, %s116
    $region4: #{tpu_custom_call.1} parent=1 // loop_header_branch
      %16 = sbr.rel (%p14) target = $region8
    $region5: #{tpu_custom_call.1} parent=1 // loop_body
      %s18 = ssub.s32 %s13, 1
      %s19 = ssub.s32 %s13, 2
      %s20 = sadd.s32 %s13, 1
      %s21 = ssub.s32 %s13, %s20
      %p22 = scmp.eq.s32.totalorder %s21, 0
      %s24 = sadd.s32 %s23, 1
      %s25 = scalar_select %p22, %s23, %s24
      %p28 = pneg %p22
      %p29 = scmp.eq.s32.totalorder %s13, 1
      %p30 = por %p28, %p29
      %p31 = scmp.ne.s32.totalorder %s23, %s26
      %p32 = scmp.eq.s32.totalorder %s13, 0
      %p33 = por %p31, %p32
      %p34 = scmp.ne.s32.totalorder %s23, %s26
      %p35 = scmp.eq.s32.totalorder %s18, 1
      %p36 = por %p34, %p35
      %p37 = scmp.ne.s32.totalorder %s26, %s27
      %p38 = scmp.eq.s32.totalorder %s18, 0
      %p39 = por %p37, %p38
      %p40 = scmp.ne.s32.totalorder %s26, %s27
      %p41 = scmp.eq.s32.totalorder %s19, 1
      %p42 = por %p40, %p41
      %p44 = scmp.ne.s32.totalorder %s27, %s43
      %p45 = scmp.eq.s32.totalorder %s19, 0
      %p46 = por %p44, %p45
      %s48 = sadd.s32 %s47, 1
      %p51 = scmp.eq.s32.totalorder %s13, 1
      %p52 = scmp.ne.s32.totalorder %s47, %s49
      %p53 = scmp.eq.s32.totalorder %s13, 0
      %p54 = por %p52, %p53
      %p55 = scmp.ne.s32.totalorder %s47, %s49
      %p56 = scmp.eq.s32.totalorder %s18, 1
      %p57 = por %p55, %p56
      %p58 = scmp.ne.s32.totalorder %s49, %s50
      %p59 = scmp.eq.s32.totalorder %s18, 0
      %p60 = por %p58, %p59
      %p61 = scmp.ne.s32.totalorder %s49, %s50
      %p62 = scmp.eq.s32.totalorder %s19, 1
      %p63 = por %p61, %p62
      %p65 = scmp.ne.s32.totalorder %s50, %s64
      %p66 = scmp.eq.s32.totalorder %s19, 0
      %p67 = por %p65, %p66
      %s69 = sadd.s32 %s68, 1
      %p72 = scmp.eq.s32.totalorder %s13, 1
      %p73 = scmp.ne.s32.totalorder %s68, %s70
      %p74 = scmp.eq.s32.totalorder %s13, 0
      %p75 = por %p73, %p74
      %p76 = scmp.ne.s32.totalorder %s68, %s70
      %p77 = scmp.eq.s32.totalorder %s18, 1
      %p78 = por %p76, %p77
      %p79 = scmp.ne.s32.totalorder %s70, %s71
      %p80 = scmp.eq.s32.totalorder %s18, 0
      %p81 = por %p79, %p80
      %p82 = scmp.ne.s32.totalorder %s70, %s71
      %p83 = scmp.eq.s32.totalorder %s19, 1
      %p84 = por %p82, %p83
      %p86 = scmp.ne.s32.totalorder %s71, %s85
      %p87 = scmp.eq.s32.totalorder %s19, 0
      %p88 = por %p86, %p87
      %s90 = sadd.s32 %s89, 1
      %p93 = scmp.eq.s32.totalorder %s13, 1
      %p94 = scmp.ne.s32.totalorder %s89, %s91
      %p95 = scmp.eq.s32.totalorder %s13, 0
      %p96 = por %p94, %p95
      %p97 = scmp.ne.s32.totalorder %s89, %s91
      %p98 = scmp.eq.s32.totalorder %s18, 1
      %p99 = por %p97, %p98
      %p100 = scmp.ne.s32.totalorder %s91, %s92
      %p101 = scmp.eq.s32.totalorder %s18, 0
      %p102 = por %p100, %p101
      %p103 = scmp.ne.s32.totalorder %s91, %s92
      %p104 = scmp.eq.s32.totalorder %s19, 1
      %p105 = por %p103, %p104
      %p107 = scmp.ne.s32.totalorder %s92, %s106
      %p108 = scmp.eq.s32.totalorder %s19, 0
      %p109 = por %p107, %p108
      %s110 = ssub.s32 %s13, %s20
      %p111 = scmp.eq.s32.totalorder %s110, 0
      %s113 = sadd.s32 %s112, 1
      %s114 = scalar_select %p111, %s112, %s113
      %p117 = pneg %p111
      %p118 = scmp.eq.s32.totalorder %s13, 1
      %p119 = por %p117, %p118
      %p120 = scmp.ne.s32.totalorder %s112, %s115
      %p121 = scmp.eq.s32.totalorder %s13, 0
      %p122 = por %p120, %p121
      %p123 = scmp.ne.s32.totalorder %s112, %s115
      %p124 = scmp.eq.s32.totalorder %s18, 1
      %p125 = por %p123, %p124
      %p126 = scmp.ne.s32.totalorder %s115, %s116
      %p127 = scmp.eq.s32.totalorder %s18, 0
      %p128 = por %p126, %p127
      %p129 = scmp.ne.s32.totalorder %s115, %s116
      %p130 = scmp.eq.s32.totalorder %s19, 1
      %p131 = por %p129, %p130
      %p133 = scmp.ne.s32.totalorder %s116, %s132
      %p134 = scmp.eq.s32.totalorder %s19, 0
      %p135 = por %p133, %p134
      %p136 = scmp.le.s32.totalorder 1, %s13
      %p137 = scmp.lt.s32.totalorder %s13, 3
      %p138 = pnand %p136, %p137
      %p139 = pneg %p138
      // Predicated region
      $region9: #{tpu_custom_call.1} parent=5 // pred_check
        _
      $region10: #{tpu_custom_call.1} parent=5 // pred_check_branch
        %141 = sbr.rel (%p138) target = $region12
      $region11: #{tpu_custom_call.1} parent=5 // pred_region
        %s142 = ssub.s32 %s13, 1
        // Predicated region
        $region13: #{tpu_custom_call.1} parent=11 // pred_check
          %p143 = pneg %p60
        $region14: #{tpu_custom_call.1} parent=11 // pred_check_branch
          %145 = sbr.rel (%p143) target = $region16
        $region15: #{tpu_custom_call.1} parent=11 // pred_region
          _
        $region16: #{tpu_custom_call.1} parent=11 // pred_fallthru
          _
        // Predicated region
        $region17: #{tpu_custom_call.1} parent=11 // pred_check
          %p146 = pneg %p81
        $region18: #{tpu_custom_call.1} parent=11 // pred_check_branch
          %148 = sbr.rel (%p146) target = $region20
        $region19: #{tpu_custom_call.1} parent=11 // pred_region
          _
        $region20: #{tpu_custom_call.1} parent=11 // pred_fallthru
          _
        // Predicated region
        $region21: #{tpu_custom_call.1} parent=11 // pred_check
          %p149 = pneg %p102
        $region22: #{tpu_custom_call.1} parent=11 // pred_check_branch
          %151 = sbr.rel (%p149) target = $region24
        $region23: #{tpu_custom_call.1} parent=11 // pred_region
          _
        $region24: #{tpu_custom_call.1} parent=11 // pred_fallthru
          _
      $region12: #{tpu_custom_call.1} parent=5 // pred_fallthru
        _
      %p152 = scmp.lt.s32.totalorder %s13, 2
      // Predicated region
      $region25: #{tpu_custom_call.1} parent=5 // pred_check
        %p153 = pneg %p152
      $region26: #{tpu_custom_call.1} parent=5 // pred_check_branch
        %155 = sbr.rel (%p153) target = $region28
      $region27: #{tpu_custom_call.1} parent=5 // pred_region
        // Predicated region
        $region29: #{tpu_custom_call.1} parent=27 // pred_check
          %p156 = pneg %p33
        $region30: #{tpu_custom_call.1} parent=27 // pred_check_branch
          %158 = sbr.rel (%p156) target = $region32
        $region31: #{tpu_custom_call.1} parent=27 // pred_region
          %p159 = scmp.lt.s32.totalorder %s13, 1
          %s160 = scalar_select %p159, %s13, 1
          %s161 = smul.addr %s160, 2
          %s162 = smul.addr %s161, 4
          %s163 = scalar_lea.vmem %s0, %s162
        $region32: #{tpu_custom_call.1} parent=27 // pred_fallthru
          _
      $region28: #{tpu_custom_call.1} parent=5 // pred_fallthru
        _
      %p164 = scmp.le.s32.totalorder 1, %s13
      %p165 = scmp.lt.s32.totalorder %s13, 3
      %p166 = pnand %p164, %p165
      %p167 = pneg %p166
      // Predicated region
      $region33: #{tpu_custom_call.1} parent=5 // pred_check
        _
      $region34: #{tpu_custom_call.1} parent=5 // pred_check_branch
        %169 = sbr.rel (%p166) target = $region36
      $region35: #{tpu_custom_call.1} parent=5 // pred_region
        %s170 = ssub.s32 %s13, 1
        %p171 = scmp.lt.s32.totalorder %s18, 1
        %s172 = scalar_select %p171, %s18, 1
        %s173 = smul.addr %s172, 2
        %s174 = smul.addr %s173, 4
        %s175 = scalar_lea.vmem %s0, %s174
        %p176 = pneg %p39
        %p177 = pneg %p36
        %p178 = pneg %p60
        %p179 = pneg %p57
        %p180 = pneg %p81
        %p181 = pneg %p78
        %p182 = pneg %p102
        %p183 = pneg %p99
        %p184 = pneg %p128
        %p185 = pneg %p125
        %s186 = sand.u32 %s115, 1
        %s187 = scalar_lea.sflag [#allocation3], %s186
        %s188 = sand.u32 %s115, 1
        %s189 = smul.addr %s188, 8
        %s190 = scalar_lea.vmem [#allocation2], %s189
        %p191 = scmp.lt.s32.totalorder %s18, 1
        %s192 = scalar_select %p191, %s18, 1
        %s193 = smul.addr %s192, 2
        %s194 = smul.addr %s193, 4
        %s195 = scalar_lea.vmem %s0, %s194
        %v196 = vld [vmem:[%s195] sm:$0xff]
        %v198 = vcombine.high %v196, %v196
        %200 = vrot.lane.b32.xlu0 %v196, 17
        %v201 = vpop.permute.xlu0 %200
        %202 = vrot.lane.b32.xlu0 %v198, 17
        %v203 = vpop.permute.xlu0 %202
        %v204 = vlaneseq
        %v205 = vand.u32 %v204, 127
        %vm206 = vcmp.lt.s32.totalorder %v205, 17
        %v207 = vsel %vm206, %v201, %v203
        %v208 = vsel %vm206, %v203, %v201
        %v209 = vld [vmem:[%s3] ss:$8 sm:$0x3]
        %v211 = vlaneseq
        %v212 = vshrl.u32 %v211, 7
        %v213 = vsub.s32 0, %v212
        %v214 = vrot.slane %v209, %v213
        %v215 = vlaneseq
        %v216 = vshrl.u32 %v215, 7
        %v217 = vsub.s32 1, %v216
        %v218 = vrot.slane %v209, %v217
        %v221 = vmul.f32 %v208, %v214
        %v222 = vmul.f32 %v207, %v218
        %v223 = vld [vmem:[%s1] sm:$0xf]
        %224 = vrot.lane.b32.xlu0 %v196, 16
        %v225 = vpop.permute.xlu0 %224
        %226 = vrot.lane.b32.xlu0 %v198, 16
        %v227 = vpop.permute.xlu0 %226
        %vm228 = vcmp.lt.s32.totalorder %v205, 16
        %v229 = vsel %vm228, %v225, %v227
        %v230 = vsel %vm228, %v227, %v225
        %s231 = scalar_lea.vmem %s3, 1
        %v232 = vld [vmem:[%s231] ss:$8 sm:$0x3]
        %v234 = vlaneseq
        %v235 = vshrl.u32 %v234, 7
        %v236 = vsub.s32 0, %v235
        %v237 = vrot.slane %v232, %v236
        %v238 = vlaneseq
        %v239 = vshrl.u32 %v238, 7
        %v240 = vsub.s32 1, %v239
        %v241 = vrot.slane %v232, %v240
        %v244 = vmul.f32 %v230, %v237
        %v245 = vmul.f32 %v229, %v241
        %s246 = scalar_lea.vmem %s1, 4
        %v247 = vld [vmem:[%s246] sm:$0xf]
        %vm248 = vcmask 31744
        %v250 = vsel %vm248, %v247, 0
        %vm252 = vcmask 1043456
        %v254 = vsel %vm252, %v244, 0
        %v257 = vsel %vm252, %v245, 0
        %259 = vmatprep.subr.mxu0 %v257
        %260 = vmatpush1.msra.mxu0 %v254
        %261 = vmatprep.subr.mxu0 0.0
        %262 = vmatpush1.msra.mxu0 0.0
        %263 = vmatprep.subr.mxu0 0.0
        %264 = vmatpush1.msra.mxu0 0.0
        %265 = vmatprep.subr.mxu0 0.0
        %266 = vmatpush1.msra.mxu0 0.0
        %267 = vmatprep.subr.mxu0 0.0
        %268 = vmatpush1.msra.mxu0 0.0
        %269 = vmatprep.subr.mxu0 0.0
        %270 = vmatpush1.msra.mxu0 0.0
        %271 = vmatprep.subr.mxu0 0.0
        %272 = vmatpush1.msra.mxu0 0.0
        %273 = vmatprep.subr.mxu0 0.0
        %274 = vmatpush1.msra.mxu0 0.0
        %275 = vmatprep.subr.mxu0 0.0
        %276 = vmatpush1.msra.mxu0 0.0
        %277 = vmatprep.subr.mxu0 0.0
        %278 = vmatpush1.msra.mxu0 0.0
        %279 = vmatprep.subr.mxu0 0.0
        %280 = vmatpush1.msra.mxu0 0.0
        %281 = vmatprep.subr.mxu0 0.0
        %282 = vmatpush1.msra.mxu0 0.0
        %283 = vmatprep.subr.mxu0 0.0
        %284 = vmatpush1.msra.mxu0 0.0
        %285 = vmatprep.subr.mxu0 0.0
        %286 = vmatpush1.msra.mxu0 0.0
        %287 = vmatprep.subr.mxu0 0.0
        %288 = vmatpush1.msra.mxu0 0.0
        %289 = vmatprep.subr.mxu0 0.0
        %290 = vmatpush1.msra.mxu0 0.0
        %291 = vmatprep.subr.mxu0 0.0
        %292 = vmatpush1.msra.mxu0 0.0
        %293 = vmatprep.subr.mxu0 0.0
        %294 = vmatpush1.msra.mxu0 0.0
        %295 = vmatprep.subr.mxu0 0.0
        %296 = vmatpush1.msra.mxu0 0.0
        %297 = vmatprep.subr.mxu0 0.0
        %298 = vmatpush1.msra.mxu0 0.0
        %299 = vmatprep.subr.mxu0 0.0
        %300 = vmatpush1.msra.mxu0 0.0
        %301 = vmatprep.subr.mxu0 0.0
        %302 = vmatpush1.msra.mxu0 0.0
        %303 = vmatprep.subr.mxu0 0.0
        %304 = vmatpush1.msra.mxu0 0.0
        %305 = vmatprep.subr.mxu0 0.0
        %306 = vmatpush1.msra.mxu0 0.0
        %307 = vmatprep.subr.mxu0 0.0
        %308 = vmatpush1.msra.mxu0 0.0
        %309 = vmatprep.subr.mxu0 0.0
        %310 = vmatpush1.msra.mxu0 0.0
        %311 = vmatprep.subr.mxu0 0.0
        %312 = vmatpush1.msra.mxu0 0.0
        %313 = vmatprep.subr.mxu0 0.0
        %314 = vmatpush1.msra.mxu0 0.0
        %315 = vmatprep.subr.mxu0 0.0
        %316 = vmatpush1.msra.mxu0 0.0
        %317 = vmatprep.subr.mxu0 0.0
        %318 = vmatpush1.msra.mxu0 0.0
        %319 = vmatprep.subr.mxu0 0.0
        %320 = vmatpush1.msra.mxu0 0.0
        %321 = vmatprep.subr.mxu0 0.0
        %322 = vmatpush1.msra.mxu0 0.0
        %323 = vmatprep.mubr.f32.mxu0 0.0
        %324 = vmatmul.mubr.f32.gmra.mrb[0].mxu0 %v250
        %v325 = vpop.f32.mrb[0].mxu0
        %v326 = vadd.f32 0.0, %v325
        %v327 = vpop.f32.mrb[0].mxu0
        %v328 = vadd.f32 0.0, %v327
        %329 = vdwg.mxu0
        %v331 = vsel %vm248, %v223, 0
        %v334 = vsel %vm252, %v221, 0
        %v337 = vsel %vm252, %v222, 0
        %339 = vmatprep.subr.mxu0 %v337
        %340 = vmatpush1.msra.mxu0 %v334
        %341 = vmatprep.subr.mxu0 0.0
        %342 = vmatpush1.msra.mxu0 0.0
        %343 = vmatprep.subr.mxu0 0.0
        %344 = vmatpush1.msra.mxu0 0.0
        %345 = vmatprep.subr.mxu0 0.0
        %346 = vmatpush1.msra.mxu0 0.0
        %347 = vmatprep.subr.mxu0 0.0
        %348 = vmatpush1.msra.mxu0 0.0
        %349 = vmatprep.subr.mxu0 0.0
        %350 = vmatpush1.msra.mxu0 0.0
        %351 = vmatprep.subr.mxu0 0.0
        %352 = vmatpush1.msra.mxu0 0.0
        %353 = vmatprep.subr.mxu0 0.0
        %354 = vmatpush1.msra.mxu0 0.0
        %355 = vmatprep.subr.mxu0 0.0
        %356 = vmatpush1.msra.mxu0 0.0
        %357 = vmatprep.subr.mxu0 0.0
        %358 = vmatpush1.msra.mxu0 0.0
        %359 = vmatprep.subr.mxu0 0.0
        %360 = vmatpush1.msra.mxu0 0.0
        %361 = vmatprep.subr.mxu0 0.0
        %362 = vmatpush1.msra.mxu0 0.0
        %363 = vmatprep.subr.mxu0 0.0
        %364 = vmatpush1.msra.mxu0 0.0
        %365 = vmatprep.subr.mxu0 0.0
        %366 = vmatpush1.msra.mxu0 0.0
        %367 = vmatprep.subr.mxu0 0.0
        %368 = vmatpush1.msra.mxu0 0.0
        %369 = vmatprep.subr.mxu0 0.0
        %370 = vmatpush1.msra.mxu0 0.0
        %371 = vmatprep.subr.mxu0 0.0
        %372 = vmatpush1.msra.mxu0 0.0
        %373 = vmatprep.subr.mxu0 0.0
        %374 = vmatpush1.msra.mxu0 0.0
        %375 = vmatprep.subr.mxu0 0.0
        %376 = vmatpush1.msra.mxu0 0.0
        %377 = vmatprep.subr.mxu0 0.0
        %378 = vmatpush1.msra.mxu0 0.0
        %379 = vmatprep.subr.mxu0 0.0
        %380 = vmatpush1.msra.mxu0 0.0
        %381 = vmatprep.subr.mxu0 0.0
        %382 = vmatpush1.msra.mxu0 0.0
        %383 = vmatprep.subr.mxu0 0.0
        %384 = vmatpush1.msra.mxu0 0.0
        %385 = vmatprep.subr.mxu0 0.0
        %386 = vmatpush1.msra.mxu0 0.0
        %387 = vmatprep.subr.mxu0 0.0
        %388 = vmatpush1.msra.mxu0 0.0
        %389 = vmatprep.subr.mxu0 0.0
        %390 = vmatpush1.msra.mxu0 0.0
        %391 = vmatprep.subr.mxu0 0.0
        %392 = vmatpush1.msra.mxu0 0.0
        %393 = vmatprep.subr.mxu0 0.0
        %394 = vmatpush1.msra.mxu0 0.0
        %395 = vmatprep.subr.mxu0 0.0
        %396 = vmatpush1.msra.mxu0 0.0
        %397 = vmatprep.subr.mxu0 0.0
        %398 = vmatpush1.msra.mxu0 0.0
        %399 = vmatprep.subr.mxu0 0.0
        %400 = vmatpush1.msra.mxu0 0.0
        %401 = vmatprep.subr.mxu0 0.0
        %402 = vmatpush1.msra.mxu0 0.0
        %403 = vmatprep.mubr.f32.mxu0 0.0
        %404 = vmatmul.mubr.f32.gmra.mrb[0].mxu0 %v331
        %v405 = vpop.f32.mrb[0].mxu0
        %v406 = vadd.f32 %v326, %v405
        %v407 = vpop.f32.mrb[0].mxu0
        %v408 = vadd.f32 %v328, %v407
        %409 = vdwg.mxu0
        %410 = vrot.lane.b32.xlu0 %v196, 15
        %v411 = vpop.permute.xlu0 %410
        %412 = vrot.lane.b32.xlu0 %v198, 15
        %v413 = vpop.permute.xlu0 %412
        %vm414 = vcmp.lt.s32.totalorder %v205, 15
        %v415 = vsel %vm414, %v411, %v413
        %v416 = vsel %vm414, %v413, %v411
        %s417 = scalar_lea.vmem %s3, 2
        %v418 = vld [vmem:[%s417] ss:$8 sm:$0x3]
        %v420 = vlaneseq
        %v421 = vshrl.u32 %v420, 7
        %v422 = vsub.s32 0, %v421
        %v423 = vrot.slane %v418, %v422
        %v424 = vlaneseq
        %v425 = vshrl.u32 %v424, 7
        %v426 = vsub.s32 1, %v425
        %v427 = vrot.slane %v418, %v426
        %v430 = vmul.f32 %v416, %v423
        %v431 = vmul.f32 %v415, %v427
        %s432 = scalar_lea.vmem %s1, 8
        %v433 = vld [vmem:[%s432] sm:$0xf]
        %v435 = vsel %vm248, %v433, 0
        %v438 = vsel %vm252, %v430, 0
        %v441 = vsel %vm252, %v431, 0
        %443 = vmatprep.subr.mxu0 %v441
        %444 = vmatpush1.msra.mxu0 %v438
        %445 = vmatprep.subr.mxu0 0.0
        %446 = vmatpush1.msra.mxu0 0.0
        %447 = vmatprep.subr.mxu0 0.0
        %448 = vmatpush1.msra.mxu0 0.0
        %449 = vmatprep.subr.mxu0 0.0
        %450 = vmatpush1.msra.mxu0 0.0
        %451 = vmatprep.subr.mxu0 0.0
        %452 = vmatpush1.msra.mxu0 0.0
        %453 = vmatprep.subr.mxu0 0.0
        %454 = vmatpush1.msra.mxu0 0.0
        %455 = vmatprep.subr.mxu0 0.0
        %456 = vmatpush1.msra.mxu0 0.0
        %457 = vmatprep.subr.mxu0 0.0
        %458 = vmatpush1.msra.mxu0 0.0
        %459 = vmatprep.subr.mxu0 0.0
        %460 = vmatpush1.msra.mxu0 0.0
        %461 = vmatprep.subr.mxu0 0.0
        %462 = vmatpush1.msra.mxu0 0.0
        %463 = vmatprep.subr.mxu0 0.0
        %464 = vmatpush1.msra.mxu0 0.0
        %465 = vmatprep.subr.mxu0 0.0
        %466 = vmatpush1.msra.mxu0 0.0
        %467 = vmatprep.subr.mxu0 0.0
        %468 = vmatpush1.msra.mxu0 0.0
        %469 = vmatprep.subr.mxu0 0.0
        %470 = vmatpush1.msra.mxu0 0.0
        %471 = vmatprep.subr.mxu0 0.0
        %472 = vmatpush1.msra.mxu0 0.0
        %473 = vmatprep.subr.mxu0 0.0
        %474 = vmatpush1.msra.mxu0 0.0
        %475 = vmatprep.subr.mxu0 0.0
        %476 = vmatpush1.msra.mxu0 0.0
        %477 = vmatprep.subr.mxu0 0.0
        %478 = vmatpush1.msra.mxu0 0.0
        %479 = vmatprep.subr.mxu0 0.0
        %480 = vmatpush1.msra.mxu0 0.0
        %481 = vmatprep.subr.mxu0 0.0
        %482 = vmatpush1.msra.mxu0 0.0
        %483 = vmatprep.subr.mxu0 0.0
        %484 = vmatpush1.msra.mxu0 0.0
        %485 = vmatprep.subr.mxu0 0.0
        %486 = vmatpush1.msra.mxu0 0.0
        %487 = vmatprep.subr.mxu0 0.0
        %488 = vmatpush1.msra.mxu0 0.0
        %489 = vmatprep.subr.mxu0 0.0
        %490 = vmatpush1.msra.mxu0 0.0
        %491 = vmatprep.subr.mxu0 0.0
        %492 = vmatpush1.msra.mxu0 0.0
        %493 = vmatprep.subr.mxu0 0.0
        %494 = vmatpush1.msra.mxu0 0.0
        %495 = vmatprep.subr.mxu0 0.0
        %496 = vmatpush1.msra.mxu0 0.0
        %497 = vmatprep.subr.mxu0 0.0
        %498 = vmatpush1.msra.mxu0 0.0
        %499 = vmatprep.subr.mxu0 0.0
        %500 = vmatpush1.msra.mxu0 0.0
        %501 = vmatprep.subr.mxu0 0.0
        %502 = vmatpush1.msra.mxu0 0.0
        %503 = vmatprep.subr.mxu0 0.0
        %504 = vmatpush1.msra.mxu0 0.0
        %505 = vmatprep.subr.mxu0 0.0
        %506 = vmatpush1.msra.mxu0 0.0
        %507 = vmatprep.mubr.f32.mxu0 0.0
        %508 = vmatmul.mubr.f32.gmra.mrb[0].mxu0 %v435
        %v509 = vpop.f32.mrb[0].mxu0
        %v510 = vadd.f32 0.0, %v509
        %v511 = vpop.f32.mrb[0].mxu0
        %v512 = vadd.f32 0.0, %v511
        %513 = vdwg.mxu0
        %v514 = vadd.f32 %v406, %v510
        %v515 = vadd.f32 %v408, %v512
        %516 = vrot.lane.b32.xlu0 %v196, 1
        %v517 = vpop.permute.xlu0 %516
        %518 = vrot.lane.b32.xlu0 %v198, 1
        %v519 = vpop.permute.xlu0 %518
        %vm520 = vcmp.lt.s32.totalorder %v205, 1
        %v521 = vsel %vm520, %v517, %v519
        %v522 = vsel %vm520, %v519, %v517
        %s523 = scalar_lea.vmem %s3, 3
        %v524 = vld [vmem:[%s523] ss:$8 sm:$0x3]
        %v526 = vlaneseq
        %v527 = vshrl.u32 %v526, 7
        %v528 = vsub.s32 0, %v527
        %v529 = vrot.slane %v524, %v528
        %v530 = vlaneseq
        %v531 = vshrl.u32 %v530, 7
        %v532 = vsub.s32 1, %v531
        %v533 = vrot.slane %v524, %v532
        %v536 = vmul.f32 %v522, %v529
        %v537 = vmul.f32 %v521, %v533
        %s538 = scalar_lea.vmem %s1, 12
        %v539 = vld [vmem:[%s538] sm:$0xf]
        %v541 = vsel %vm248, %v539, 0
        %v544 = vsel %vm252, %v536, 0
        %v547 = vsel %vm252, %v537, 0
        %549 = vmatprep.subr.mxu0 %v547
        %550 = vmatpush1.msra.mxu0 %v544
        %551 = vmatprep.subr.mxu0 0.0
        %552 = vmatpush1.msra.mxu0 0.0
        %553 = vmatprep.subr.mxu0 0.0
        %554 = vmatpush1.msra.mxu0 0.0
        %555 = vmatprep.subr.mxu0 0.0
        %556 = vmatpush1.msra.mxu0 0.0
        %557 = vmatprep.subr.mxu0 0.0
        %558 = vmatpush1.msra.mxu0 0.0
        %559 = vmatprep.subr.mxu0 0.0
        %560 = vmatpush1.msra.mxu0 0.0
        %561 = vmatprep.subr.mxu0 0.0
        %562 = vmatpush1.msra.mxu0 0.0
        %563 = vmatprep.subr.mxu0 0.0
        %564 = vmatpush1.msra.mxu0 0.0
        %565 = vmatprep.subr.mxu0 0.0
        %566 = vmatpush1.msra.mxu0 0.0
        %567 = vmatprep.subr.mxu0 0.0
        %568 = vmatpush1.msra.mxu0 0.0
        %569 = vmatprep.subr.mxu0 0.0
        %570 = vmatpush1.msra.mxu0 0.0
        %571 = vmatprep.subr.mxu0 0.0
        %572 = vmatpush1.msra.mxu0 0.0
        %573 = vmatprep.subr.mxu0 0.0
        %574 = vmatpush1.msra.mxu0 0.0
        %575 = vmatprep.subr.mxu0 0.0
        %576 = vmatpush1.msra.mxu0 0.0
        %577 = vmatprep.subr.mxu0 0.0
        %578 = vmatpush1.msra.mxu0 0.0
        %579 = vmatprep.subr.mxu0 0.0
        %580 = vmatpush1.msra.mxu0 0.0
        %581 = vmatprep.subr.mxu0 0.0
        %582 = vmatpush1.msra.mxu0 0.0
        %583 = vmatprep.subr.mxu0 0.0
        %584 = vmatpush1.msra.mxu0 0.0
        %585 = vmatprep.subr.mxu0 0.0
        %586 = vmatpush1.msra.mxu0 0.0
        %587 = vmatprep.subr.mxu0 0.0
        %588 = vmatpush1.msra.mxu0 0.0
        %589 = vmatprep.subr.mxu0 0.0
        %590 = vmatpush1.msra.mxu0 0.0
        %591 = vmatprep.subr.mxu0 0.0
        %592 = vmatpush1.msra.mxu0 0.0
        %593 = vmatprep.subr.mxu0 0.0
        %594 = vmatpush1.msra.mxu0 0.0
        %595 = vmatprep.subr.mxu0 0.0
        %596 = vmatpush1.msra.mxu0 0.0
        %597 = vmatprep.subr.mxu0 0.0
        %598 = vmatpush1.msra.mxu0 0.0
        %599 = vmatprep.subr.mxu0 0.0
        %600 = vmatpush1.msra.mxu0 0.0
        %601 = vmatprep.subr.mxu0 0.0
        %602 = vmatpush1.msra.mxu0 0.0
        %603 = vmatprep.subr.mxu0 0.0
        %604 = vmatpush1.msra.mxu0 0.0
        %605 = vmatprep.subr.mxu0 0.0
        %606 = vmatpush1.msra.mxu0 0.0
        %607 = vmatprep.subr.mxu0 0.0
        %608 = vmatpush1.msra.mxu0 0.0
        %609 = vmatprep.subr.mxu0 0.0
        %610 = vmatpush1.msra.mxu0 0.0
        %611 = vmatprep.subr.mxu0 0.0
        %612 = vmatpush1.msra.mxu0 0.0
        %613 = vmatprep.mubr.f32.mxu0 0.0
        %614 = vmatmul.mubr.f32.gmra.mrb[0].mxu0 %v541
        %v615 = vpop.f32.mrb[0].mxu0
        %v616 = vadd.f32 0.0, %v615
        %v617 = vpop.f32.mrb[0].mxu0
        %v618 = vadd.f32 0.0, %v617
        %619 = vdwg.mxu0
        %v620 = vadd.f32 %v514, %v616
        %v621 = vadd.f32 %v515, %v618
        %s622 = scalar_lea.vmem %s3, 4
        %v623 = vld [vmem:[%s622] ss:$8 sm:$0x3]
        %v625 = vlaneseq
        %v626 = vshrl.u32 %v625, 7
        %v627 = vsub.s32 0, %v626
        %v628 = vrot.slane %v623, %v627
        %v629 = vlaneseq
        %v630 = vshrl.u32 %v629, 7
        %v631 = vsub.s32 1, %v630
        %v632 = vrot.slane %v623, %v631
        %v633 = vcombine.low %v628, %v632
        %v635 = vmul.f32 %v196, %v633
        %s636 = scalar_lea.vmem %s1, 16
        %v637 = vld [vmem:[%s636] sm:$0xf]
        %v639 = vcombine.high %v635, %v635
        %v641 = vsel %vm248, %v637, 0
        %v643 = vsel %vm252, %v635, 0
        %v645 = vsel %vm252, %v639, 0
        %647 = vmatprep.subr.mxu0 %v645
        %648 = vmatpush1.msra.mxu0 %v643
        %649 = vmatprep.subr.mxu0 0.0
        %650 = vmatpush1.msra.mxu0 0.0
        %651 = vmatprep.subr.mxu0 0.0
        %652 = vmatpush1.msra.mxu0 0.0
        %653 = vmatprep.subr.mxu0 0.0
        %654 = vmatpush1.msra.mxu0 0.0
        %655 = vmatprep.subr.mxu0 0.0
        %656 = vmatpush1.msra.mxu0 0.0
        %657 = vmatprep.subr.mxu0 0.0
        %658 = vmatpush1.msra.mxu0 0.0
        %659 = vmatprep.subr.mxu0 0.0
        %660 = vmatpush1.msra.mxu0 0.0
        %661 = vmatprep.subr.mxu0 0.0
        %662 = vmatpush1.msra.mxu0 0.0
        %663 = vmatprep.subr.mxu0 0.0
        %664 = vmatpush1.msra.mxu0 0.0
        %665 = vmatprep.subr.mxu0 0.0
        %666 = vmatpush1.msra.mxu0 0.0
        %667 = vmatprep.subr.mxu0 0.0
        %668 = vmatpush1.msra.mxu0 0.0
        %669 = vmatprep.subr.mxu0 0.0
        %670 = vmatpush1.msra.mxu0 0.0
        %671 = vmatprep.subr.mxu0 0.0
        %672 = vmatpush1.msra.mxu0 0.0
        %673 = vmatprep.subr.mxu0 0.0
        %674 = vmatpush1.msra.mxu0 0.0
        %675 = vmatprep.subr.mxu0 0.0
        %676 = vmatpush1.msra.mxu0 0.0
        %677 = vmatprep.subr.mxu0 0.0
        %678 = vmatpush1.msra.mxu0 0.0
        %679 = vmatprep.subr.mxu0 0.0
        %680 = vmatpush1.msra.mxu0 0.0
        %681 = vmatprep.subr.mxu0 0.0
        %682 = vmatpush1.msra.mxu0 0.0
        %683 = vmatprep.subr.mxu0 0.0
        %684 = vmatpush1.msra.mxu0 0.0
        %685 = vmatprep.subr.mxu0 0.0
        %686 = vmatpush1.msra.mxu0 0.0
        %687 = vmatprep.subr.mxu0 0.0
        %688 = vmatpush1.msra.mxu0 0.0
        %689 = vmatprep.subr.mxu0 0.0
        %690 = vmatpush1.msra.mxu0 0.0
        %691 = vmatprep.subr.mxu0 0.0
        %692 = vmatpush1.msra.mxu0 0.0
        %693 = vmatprep.subr.mxu0 0.0
        %694 = vmatpush1.msra.mxu0 0.0
        %695 = vmatprep.subr.mxu0 0.0
        %696 = vmatpush1.msra.mxu0 0.0
        %697 = vmatprep.subr.mxu0 0.0
        %698 = vmatpush1.msra.mxu0 0.0
        %699 = vmatprep.subr.mxu0 0.0
        %700 = vmatpush1.msra.mxu0 0.0
        %701 = vmatprep.subr.mxu0 0.0
        %702 = vmatpush1.msra.mxu0 0.0
        %703 = vmatprep.subr.mxu0 0.0
        %704 = vmatpush1.msra.mxu0 0.0
        %705 = vmatprep.subr.mxu0 0.0
        %706 = vmatpush1.msra.mxu0 0.0
        %707 = vmatprep.subr.mxu0 0.0
        %708 = vmatpush1.msra.mxu0 0.0
        %709 = vmatprep.subr.mxu0 0.0
        %710 = vmatpush1.msra.mxu0 0.0
        %711 = vmatprep.mubr.f32.mxu0 0.0
        %712 = vmatmul.mubr.f32.gmra.mrb[0].mxu0 %v641
        %v713 = vpop.f32.mrb[0].mxu0
        %v714 = vadd.f32 0.0, %v713
        %v715 = vpop.f32.mrb[0].mxu0
        %v716 = vadd.f32 0.0, %v715
        %717 = vdwg.mxu0
        %v718 = vadd.f32 %v620, %v714
        %v719 = vadd.f32 %v621, %v716
        %720 = vrot.lane.b32.xlu0 %v196, 127
        %v721 = vpop.permute.xlu0 %720
        %722 = vrot.lane.b32.xlu0 %v198, 127
        %v723 = vpop.permute.xlu0 %722
        %vm724 = vcmp.lt.s32.totalorder %v205, 127
        %v725 = vsel %vm724, %v721, %v723
        %v726 = vsel %vm724, %v723, %v721
        %s727 = scalar_lea.vmem %s3, 5
        %v728 = vld [vmem:[%s727] ss:$8 sm:$0x3]
        %v730 = vlaneseq
        %v731 = vshrl.u32 %v730, 7
        %v732 = vsub.s32 0, %v731
        %v733 = vrot.slane %v728, %v732
        %v734 = vlaneseq
        %v735 = vshrl.u32 %v734, 7
        %v736 = vsub.s32 1, %v735
        %v737 = vrot.slane %v728, %v736
        %v740 = vmul.f32 %v725, %v733
        %v741 = vmul.f32 %v726, %v737
        %s742 = scalar_lea.vmem %s1, 20
        %v743 = vld [vmem:[%s742] sm:$0xf]
        %v745 = vsel %vm248, %v743, 0
        %v748 = vsel %vm252, %v740, 0
        %v751 = vsel %vm252, %v741, 0
        %753 = vmatprep.subr.mxu0 %v751
        %754 = vmatpush1.msra.mxu0 %v748
        %755 = vmatprep.subr.mxu0 0.0
        %756 = vmatpush1.msra.mxu0 0.0
        %757 = vmatprep.subr.mxu0 0.0
        %758 = vmatpush1.msra.mxu0 0.0
        %759 = vmatprep.subr.mxu0 0.0
        %760 = vmatpush1.msra.mxu0 0.0
        %761 = vmatprep.subr.mxu0 0.0
        %762 = vmatpush1.msra.mxu0 0.0
        %763 = vmatprep.subr.mxu0 0.0
        %764 = vmatpush1.msra.mxu0 0.0
        %765 = vmatprep.subr.mxu0 0.0
        %766 = vmatpush1.msra.mxu0 0.0
        %767 = vmatprep.subr.mxu0 0.0
        %768 = vmatpush1.msra.mxu0 0.0
        %769 = vmatprep.subr.mxu0 0.0
        %770 = vmatpush1.msra.mxu0 0.0
        %771 = vmatprep.subr.mxu0 0.0
        %772 = vmatpush1.msra.mxu0 0.0
        %773 = vmatprep.subr.mxu0 0.0
        %774 = vmatpush1.msra.mxu0 0.0
        %775 = vmatprep.subr.mxu0 0.0
        %776 = vmatpush1.msra.mxu0 0.0
        %777 = vmatprep.subr.mxu0 0.0
        %778 = vmatpush1.msra.mxu0 0.0
        %779 = vmatprep.subr.mxu0 0.0
        %780 = vmatpush1.msra.mxu0 0.0
        %781 = vmatprep.subr.mxu0 0.0
        %782 = vmatpush1.msra.mxu0 0.0
        %783 = vmatprep.subr.mxu0 0.0
        %784 = vmatpush1.msra.mxu0 0.0
        %785 = vmatprep.subr.mxu0 0.0
        %786 = vmatpush1.msra.mxu0 0.0
        %787 = vmatprep.subr.mxu0 0.0
        %788 = vmatpush1.msra.mxu0 0.0
        %789 = vmatprep.subr.mxu0 0.0
        %790 = vmatpush1.msra.mxu0 0.0
        %791 = vmatprep.subr.mxu0 0.0
        %792 = vmatpush1.msra.mxu0 0.0
        %793 = vmatprep.subr.mxu0 0.0
        %794 = vmatpush1.msra.mxu0 0.0
        %795 = vmatprep.subr.mxu0 0.0
        %796 = vmatpush1.msra.mxu0 0.0
        %797 = vmatprep.subr.mxu0 0.0
        %798 = vmatpush1.msra.mxu0 0.0
        %799 = vmatprep.subr.mxu0 0.0
        %800 = vmatpush1.msra.mxu0 0.0
        %801 = vmatprep.subr.mxu0 0.0
        %802 = vmatpush1.msra.mxu0 0.0
        %803 = vmatprep.subr.mxu0 0.0
        %804 = vmatpush1.msra.mxu0 0.0
        %805 = vmatprep.subr.mxu0 0.0
        %806 = vmatpush1.msra.mxu0 0.0
        %807 = vmatprep.subr.mxu0 0.0
        %808 = vmatpush1.msra.mxu0 0.0
        %809 = vmatprep.subr.mxu0 0.0
        %810 = vmatpush1.msra.mxu0 0.0
        %811 = vmatprep.subr.mxu0 0.0
        %812 = vmatpush1.msra.mxu0 0.0
        %813 = vmatprep.subr.mxu0 0.0
        %814 = vmatpush1.msra.mxu0 0.0
        %815 = vmatprep.subr.mxu0 0.0
        %816 = vmatpush1.msra.mxu0 0.0
        %817 = vmatprep.mubr.f32.mxu0 0.0
        %818 = vmatmul.mubr.f32.gmra.mrb[0].mxu0 %v745
        %v819 = vpop.f32.mrb[0].mxu0
        %v820 = vadd.f32 0.0, %v819
        %v821 = vpop.f32.mrb[0].mxu0
        %v822 = vadd.f32 0.0, %v821
        %823 = vdwg.mxu0
        %v824 = vadd.f32 %v718, %v820
        %v825 = vadd.f32 %v719, %v822
        %826 = vrot.lane.b32.xlu0 %v196, 113
        %v827 = vpop.permute.xlu0 %826
        %828 = vrot.lane.b32.xlu0 %v198, 113
        %v829 = vpop.permute.xlu0 %828
        %vm830 = vcmp.lt.s32.totalorder %v205, 113
        %v831 = vsel %vm830, %v827, %v829
        %v832 = vsel %vm830, %v829, %v827
        %s833 = scalar_lea.vmem %s3, 6
        %v834 = vld [vmem:[%s833] ss:$8 sm:$0x3]
        %v836 = vlaneseq
        %v837 = vshrl.u32 %v836, 7
        %v838 = vsub.s32 0, %v837
        %v839 = vrot.slane %v834, %v838
        %v840 = vlaneseq
        %v841 = vshrl.u32 %v840, 7
        %v842 = vsub.s32 1, %v841
        %v843 = vrot.slane %v834, %v842
        %v846 = vmul.f32 %v831, %v839
        %v847 = vmul.f32 %v832, %v843
        %s848 = scalar_lea.vmem %s1, 24
        %v849 = vld [vmem:[%s848] sm:$0xf]
        %v851 = vsel %vm248, %v849, 0
        %v854 = vsel %vm252, %v846, 0
        %v857 = vsel %vm252, %v847, 0
        %859 = vmatprep.subr.mxu0 %v857
        %860 = vmatpush1.msra.mxu0 %v854
        %861 = vmatprep.subr.mxu0 0.0
        %862 = vmatpush1.msra.mxu0 0.0
        %863 = vmatprep.subr.mxu0 0.0
        %864 = vmatpush1.msra.mxu0 0.0
        %865 = vmatprep.subr.mxu0 0.0
        %866 = vmatpush1.msra.mxu0 0.0
        %867 = vmatprep.subr.mxu0 0.0
        %868 = vmatpush1.msra.mxu0 0.0
        %869 = vmatprep.subr.mxu0 0.0
        %870 = vmatpush1.msra.mxu0 0.0
        %871 = vmatprep.subr.mxu0 0.0
        %872 = vmatpush1.msra.mxu0 0.0
        %873 = vmatprep.subr.mxu0 0.0
        %874 = vmatpush1.msra.mxu0 0.0
        %875 = vmatprep.subr.mxu0 0.0
        %876 = vmatpush1.msra.mxu0 0.0
        %877 = vmatprep.subr.mxu0 0.0
        %878 = vmatpush1.msra.mxu0 0.0
        %879 = vmatprep.subr.mxu0 0.0
        %880 = vmatpush1.msra.mxu0 0.0
        %881 = vmatprep.subr.mxu0 0.0
        %882 = vmatpush1.msra.mxu0 0.0
        %883 = vmatprep.subr.mxu0 0.0
        %884 = vmatpush1.msra.mxu0 0.0
        %885 = vmatprep.subr.mxu0 0.0
        %886 = vmatpush1.msra.mxu0 0.0
        %887 = vmatprep.subr.mxu0 0.0
        %888 = vmatpush1.msra.mxu0 0.0
        %889 = vmatprep.subr.mxu0 0.0
        %890 = vmatpush1.msra.mxu0 0.0
        %891 = vmatprep.subr.mxu0 0.0
        %892 = vmatpush1.msra.mxu0 0.0
        %893 = vmatprep.subr.mxu0 0.0
        %894 = vmatpush1.msra.mxu0 0.0
        %895 = vmatprep.subr.mxu0 0.0
        %896 = vmatpush1.msra.mxu0 0.0
        %897 = vmatprep.subr.mxu0 0.0
        %898 = vmatpush1.msra.mxu0 0.0
        %899 = vmatprep.subr.mxu0 0.0
        %900 = vmatpush1.msra.mxu0 0.0
        %901 = vmatprep.subr.mxu0 0.0
        %902 = vmatpush1.msra.mxu0 0.0
        %903 = vmatprep.subr.mxu0 0.0
        %904 = vmatpush1.msra.mxu0 0.0
        %905 = vmatprep.subr.mxu0 0.0
        %906 = vmatpush1.msra.mxu0 0.0
        %907 = vmatprep.subr.mxu0 0.0
        %908 = vmatpush1.msra.mxu0 0.0
        %909 = vmatprep.subr.mxu0 0.0
        %910 = vmatpush1.msra.mxu0 0.0
        %911 = vmatprep.subr.mxu0 0.0
        %912 = vmatpush1.msra.mxu0 0.0
        %913 = vmatprep.subr.mxu0 0.0
        %914 = vmatpush1.msra.mxu0 0.0
        %915 = vmatprep.subr.mxu0 0.0
        %916 = vmatpush1.msra.mxu0 0.0
        %917 = vmatprep.subr.mxu0 0.0
        %918 = vmatpush1.msra.mxu0 0.0
        %919 = vmatprep.subr.mxu0 0.0
        %920 = vmatpush1.msra.mxu0 0.0
        %921 = vmatprep.subr.mxu0 0.0
        %922 = vmatpush1.msra.mxu0 0.0
        %923 = vmatprep.mubr.f32.mxu0 0.0
        %924 = vmatmul.mubr.f32.gmra.mrb[0].mxu0 %v851
        %v925 = vpop.f32.mrb[0].mxu0
        %v926 = vadd.f32 0.0, %v925
        %v927 = vpop.f32.mrb[0].mxu0
        %v928 = vadd.f32 0.0, %v927
        %929 = vdwg.mxu0
        %v930 = vadd.f32 %v824, %v926
        %v931 = vadd.f32 %v825, %v928
        %932 = vrot.lane.b32.xlu0 %v196, 112
        %v933 = vpop.permute.xlu0 %932
        %934 = vrot.lane.b32.xlu0 %v198, 112
        %v935 = vpop.permute.xlu0 %934
        %vm936 = vcmp.lt.s32.totalorder %v205, 112
        %v937 = vsel %vm936, %v933, %v935
        %v938 = vsel %vm936, %v935, %v933
        %s939 = scalar_lea.vmem %s3, 7
        %v940 = vld [vmem:[%s939] ss:$8 sm:$0x3]
        %v942 = vlaneseq
        %v943 = vshrl.u32 %v942, 7
        %v944 = vsub.s32 0, %v943
        %v945 = vrot.slane %v940, %v944
        %v946 = vlaneseq
        %v947 = vshrl.u32 %v946, 7
        %v948 = vsub.s32 1, %v947
        %v949 = vrot.slane %v940, %v948
        %v952 = vmul.f32 %v937, %v945
        %v953 = vmul.f32 %v938, %v949
        %s954 = scalar_lea.vmem %s1, 28
        %v955 = vld [vmem:[%s954] sm:$0xf]
        %v957 = vsel %vm248, %v955, 0
        %v960 = vsel %vm252, %v952, 0
        %v963 = vsel %vm252, %v953, 0
        %965 = vmatprep.subr.mxu0 %v963
        %966 = vmatpush1.msra.mxu0 %v960
        %967 = vmatprep.subr.mxu0 0.0
        %968 = vmatpush1.msra.mxu0 0.0
        %969 = vmatprep.subr.mxu0 0.0
        %970 = vmatpush1.msra.mxu0 0.0
        %971 = vmatprep.subr.mxu0 0.0
        %972 = vmatpush1.msra.mxu0 0.0
        %973 = vmatprep.subr.mxu0 0.0
        %974 = vmatpush1.msra.mxu0 0.0
        %975 = vmatprep.subr.mxu0 0.0
        %976 = vmatpush1.msra.mxu0 0.0
        %977 = vmatprep.subr.mxu0 0.0
        %978 = vmatpush1.msra.mxu0 0.0
        %979 = vmatprep.subr.mxu0 0.0
        %980 = vmatpush1.msra.mxu0 0.0
        %981 = vmatprep.subr.mxu0 0.0
        %982 = vmatpush1.msra.mxu0 0.0
        %983 = vmatprep.subr.mxu0 0.0
        %984 = vmatpush1.msra.mxu0 0.0
        %985 = vmatprep.subr.mxu0 0.0
        %986 = vmatpush1.msra.mxu0 0.0
        %987 = vmatprep.subr.mxu0 0.0
        %988 = vmatpush1.msra.mxu0 0.0
        %989 = vmatprep.subr.mxu0 0.0
        %990 = vmatpush1.msra.mxu0 0.0
        %991 = vmatprep.subr.mxu0 0.0
        %992 = vmatpush1.msra.mxu0 0.0
        %993 = vmatprep.subr.mxu0 0.0
        %994 = vmatpush1.msra.mxu0 0.0
        %995 = vmatprep.subr.mxu0 0.0
        %996 = vmatpush1.msra.mxu0 0.0
        %997 = vmatprep.subr.mxu0 0.0
        %998 = vmatpush1.msra.mxu0 0.0
        %999 = vmatprep.subr.mxu0 0.0
        %1000 = vmatpush1.msra.mxu0 0.0
        %1001 = vmatprep.subr.mxu0 0.0
        %1002 = vmatpush1.msra.mxu0 0.0
        %1003 = vmatprep.subr.mxu0 0.0
        %1004 = vmatpush1.msra.mxu0 0.0
        %1005 = vmatprep.subr.mxu0 0.0
        %1006 = vmatpush1.msra.mxu0 0.0
        %1007 = vmatprep.subr.mxu0 0.0
        %1008 = vmatpush1.msra.mxu0 0.0
        %1009 = vmatprep.subr.mxu0 0.0
        %1010 = vmatpush1.msra.mxu0 0.0
        %1011 = vmatprep.subr.mxu0 0.0
        %1012 = vmatpush1.msra.mxu0 0.0
        %1013 = vmatprep.subr.mxu0 0.0
        %1014 = vmatpush1.msra.mxu0 0.0
        %1015 = vmatprep.subr.mxu0 0.0
        %1016 = vmatpush1.msra.mxu0 0.0
        %1017 = vmatprep.subr.mxu0 0.0
        %1018 = vmatpush1.msra.mxu0 0.0
        %1019 = vmatprep.subr.mxu0 0.0
        %1020 = vmatpush1.msra.mxu0 0.0
        %1021 = vmatprep.subr.mxu0 0.0
        %1022 = vmatpush1.msra.mxu0 0.0
        %1023 = vmatprep.subr.mxu0 0.0
        %1024 = vmatpush1.msra.mxu0 0.0
        %1025 = vmatprep.subr.mxu0 0.0
        %1026 = vmatpush1.msra.mxu0 0.0
        %1027 = vmatprep.subr.mxu0 0.0
        %1028 = vmatpush1.msra.mxu0 0.0
        %1029 = vmatprep.mubr.f32.mxu0 0.0
        %1030 = vmatmul.mubr.f32.gmra.mrb[0].mxu0 %v957
        %v1031 = vpop.f32.mrb[0].mxu0
        %v1032 = vadd.f32 0.0, %v1031
        %v1033 = vpop.f32.mrb[0].mxu0
        %v1034 = vadd.f32 0.0, %v1033
        %1035 = vdwg.mxu0
        %v1036 = vadd.f32 %v930, %v1032
        %v1037 = vadd.f32 %v931, %v1034
        %1038 = vrot.lane.b32.xlu0 %v196, 111
        %v1039 = vpop.permute.xlu0 %1038
        %1040 = vrot.lane.b32.xlu0 %v198, 111
        %v1041 = vpop.permute.xlu0 %1040
        %vm1042 = vcmp.lt.s32.totalorder %v205, 111
        %v1043 = vsel %vm1042, %v1039, %v1041
        %v1044 = vsel %vm1042, %v1041, %v1039
        %s1045 = scalar_lea.vmem %s3, 16
        %v1046 = vld [vmem:[%s1045] ss:$8 sm:$0x3]
        %v1048 = vlaneseq
        %v1049 = vshrl.u32 %v1048, 7
        %v1050 = vsub.s32 0, %v1049
        %v1051 = vrot.slane %v1046, %v1050
        %v1052 = vlaneseq
        %v1053 = vshrl.u32 %v1052, 7
        %v1054 = vsub.s32 1, %v1053
        %v1055 = vrot.slane %v1046, %v1054
        %v1058 = vmul.f32 %v1043, %v1051
        %v1059 = vmul.f32 %v1044, %v1055
        %s1060 = scalar_lea.vmem %s1, 32
        %v1061 = vld [vmem:[%s1060] sm:$0xf]
        %v1063 = vsel %vm248, %v1061, 0
        %v1066 = vsel %vm252, %v1058, 0
        %v1069 = vsel %vm252, %v1059, 0
        %1071 = vmatprep.subr.mxu0 %v1069
        %1072 = vmatpush1.msra.mxu0 %v1066
        %1073 = vmatprep.subr.mxu0 0.0
        %1074 = vmatpush1.msra.mxu0 0.0
        %1075 = vmatprep.subr.mxu0 0.0
        %1076 = vmatpush1.msra.mxu0 0.0
        %1077 = vmatprep.subr.mxu0 0.0
        %1078 = vmatpush1.msra.mxu0 0.0
        %1079 = vmatprep.subr.mxu0 0.0
        %1080 = vmatpush1.msra.mxu0 0.0
        %1081 = vmatprep.subr.mxu0 0.0
        %1082 = vmatpush1.msra.mxu0 0.0
        %1083 = vmatprep.subr.mxu0 0.0
        %1084 = vmatpush1.msra.mxu0 0.0
        %1085 = vmatprep.subr.mxu0 0.0
        %1086 = vmatpush1.msra.mxu0 0.0
        %1087 = vmatprep.subr.mxu0 0.0
        %1088 = vmatpush1.msra.mxu0 0.0
        %1089 = vmatprep.subr.mxu0 0.0
        %1090 = vmatpush1.msra.mxu0 0.0
        %1091 = vmatprep.subr.mxu0 0.0
        %1092 = vmatpush1.msra.mxu0 0.0
        %1093 = vmatprep.subr.mxu0 0.0
        %1094 = vmatpush1.msra.mxu0 0.0
        %1095 = vmatprep.subr.mxu0 0.0
        %1096 = vmatpush1.msra.mxu0 0.0
        %1097 = vmatprep.subr.mxu0 0.0
        %1098 = vmatpush1.msra.mxu0 0.0
        %1099 = vmatprep.subr.mxu0 0.0
        %1100 = vmatpush1.msra.mxu0 0.0
        %1101 = vmatprep.subr.mxu0 0.0
        %1102 = vmatpush1.msra.mxu0 0.0
        %1103 = vmatprep.subr.mxu0 0.0
        %1104 = vmatpush1.msra.mxu0 0.0
        %1105 = vmatprep.subr.mxu0 0.0
        %1106 = vmatpush1.msra.mxu0 0.0
        %1107 = vmatprep.subr.mxu0 0.0
        %1108 = vmatpush1.msra.mxu0 0.0
        %1109 = vmatprep.subr.mxu0 0.0
        %1110 = vmatpush1.msra.mxu0 0.0
        %1111 = vmatprep.subr.mxu0 0.0
        %1112 = vmatpush1.msra.mxu0 0.0
        %1113 = vmatprep.subr.mxu0 0.0
        %1114 = vmatpush1.msra.mxu0 0.0
        %1115 = vmatprep.subr.mxu0 0.0
        %1116 = vmatpush1.msra.mxu0 0.0
        %1117 = vmatprep.subr.mxu0 0.0
        %1118 = vmatpush1.msra.mxu0 0.0
        %1119 = vmatprep.subr.mxu0 0.0
        %1120 = vmatpush1.msra.mxu0 0.0
        %1121 = vmatprep.subr.mxu0 0.0
        %1122 = vmatpush1.msra.mxu0 0.0
        %1123 = vmatprep.subr.mxu0 0.0
        %1124 = vmatpush1.msra.mxu0 0.0
        %1125 = vmatprep.subr.mxu0 0.0
        %1126 = vmatpush1.msra.mxu0 0.0
        %1127 = vmatprep.subr.mxu0 0.0
        %1128 = vmatpush1.msra.mxu0 0.0
        %1129 = vmatprep.subr.mxu0 0.0
        %1130 = vmatpush1.msra.mxu0 0.0
        %1131 = vmatprep.subr.mxu0 0.0
        %1132 = vmatpush1.msra.mxu0 0.0
        %1133 = vmatprep.subr.mxu0 0.0
        %1134 = vmatpush1.msra.mxu0 0.0
        %1135 = vmatprep.mubr.f32.mxu0 0.0
        %1136 = vmatmul.mubr.f32.gmra.mrb[0].mxu0 %v1063
        %v1137 = vpop.f32.mrb[0].mxu0
        %v1138 = vadd.f32 0.0, %v1137
        %v1139 = vpop.f32.mrb[0].mxu0
        %v1140 = vadd.f32 0.0, %v1139
        %1141 = vdwg.mxu0
        %v1142 = vadd.f32 %v1036, %v1138
        %v1143 = vadd.f32 %v1037, %v1140
        %v1144 = vld [vmem:[%s2] sm:$0xf]
        %1146 = vset.pattern.permute.xlu0 0
        %1147 = vperm.xlu0 %1146, %v1144
        %v1148 = vpop.permute.xlu0 %1147
        %v1150 = vadd.f32 %v1142, %v1148
        %v1151 = vadd.f32 %v1143, %v1148
        %v1154 = vcombine.low %v1150, %v1151
        %1156 = vst [vmem:[%s190] sm:$0xff] %v1154
        %s1157 = sand.u32 %s115, 1
        %s1158 = scalar_lea.sflag [#allocation3], %s1157
        %s1159 = sand.u32 %s115, 1
        %s1160 = smul.addr %s1159, 8
        %s1161 = scalar_lea.vmem [#allocation2], %s1160
        // Predicated region
        $region37: #{tpu_custom_call.1} parent=35 // pred_check
          %p1162 = pneg %p125
        $region38: #{tpu_custom_call.1} parent=35 // pred_check_branch
          %1164 = sbr.rel (%p1162) target = $region40
        $region39: #{tpu_custom_call.1} parent=35 // pred_region
          %s1166 = ssub.s32 128, 128
          %1167 = vsyncadd %s1158, %s1166
          %s1168 = smul.addr %s18, 2
          %s1169 = smul.addr %s1168, 64
          %s1170 = scalar_lea.hbm %s4, %s1169
          %s1172 = sshll.u32 %s1161, 4
          %s1173 = int_to_ptr.vmem [resolvable:$true] %s1172
          %1175 = dma.vmem_to_hbm [thread:$0]  %s1173, 128, %s1170, %s1158
        $region40: #{tpu_custom_call.1} parent=35 // pred_fallthru
          _
      $region36: #{tpu_custom_call.1} parent=5 // pred_fallthru
        _
      %p1176 = scmp.le.s32.totalorder 2, %s13
      // Predicated region
      $region41: #{tpu_custom_call.1} parent=5 // pred_check
        %p1177 = pneg %p1176
      $region42: #{tpu_custom_call.1} parent=5 // pred_check_branch
        %1179 = sbr.rel (%p1177) target = $region44
      $region43: #{tpu_custom_call.1} parent=5 // pred_region
        %s1180 = ssub.s32 %s13, 2
        // Predicated region
        $region45: #{tpu_custom_call.1} parent=43 // pred_check
          %p1181 = pneg %p131
        $region46: #{tpu_custom_call.1} parent=43 // pred_check_branch
          %1183 = sbr.rel (%p1181) target = $region48
        $region47: #{tpu_custom_call.1} parent=43 // pred_region
          %s1184 = sand.u32 %s116, 1
          %s1185 = scalar_lea.sflag [#allocation3], %s1184
          %s1186 = sand.u32 %s116, 1
          %s1187 = smul.addr %s1186, 8
          %s1188 = scalar_lea.vmem [#allocation2], %s1187
          %1189 = dma.done %s1185, 128
        $region48: #{tpu_custom_call.1} parent=43 // pred_fallthru
          _
      $region44: #{tpu_custom_call.1} parent=5 // pred_fallthru
        _
    $region6: #{tpu_custom_call.1} parent=1 // loop_footer
      %s17 = sadd.s32 1, %s13
    $region7: #{tpu_custom_call.1} parent=1 // loop_footer_branch
      %12 = sbr.rel target = $region3
    $region8: #{tpu_custom_call.1} parent=1 // loop_exit
      _
    %1190 = vsyncpa [#allocation3], 1
    %s1191 = scalar_lea.sflag [#allocation3], 1
    %1192 = vsyncpa %s1191, 1

</llo_original>
